<compile_context>
chip_gen: v5e
topology: v5e:2x2
jax: 0.10.0
libtpu: 0.0.40
codegen_flags: <defaults>
</compile_context>

<pallas_src>
import math

import jax
import jax.numpy as jnp
from jax import lax
from jax.experimental import pallas as pl
from jax.experimental.pallas import tpu as pltpu


def _conv_out_size(size, kernel=3, stride=2, pad=1):
    return (size + 2 * pad - kernel) // stride + 1


def _lane_tiling(L):
    """Pick a lane tile TL (multiple of 128) and padded lane extent L_pad (multiple of TL)."""
    LANE = 128
    l_pad = -(-L // LANE) * LANE
    if l_pad <= 2048:            # small problems: one lane-dense tile
        return l_pad, l_pad
    tl = 512                     # larger problems: 512-lane tiles -> several parallel grid steps
    return tl, -(-L // tl) * tl


def patch_merging_kernel(w_ref, b_ref, cols_ref, o_ref):
    # w_ref:    (Cout, K)   folded conv+BN weight, K = 9*Cin  (one fused matmul over all taps)
    # b_ref:    (Cout, 1)   folded bias
    # cols_ref: (K, TL)     im2col tile; lanes = flattened (N, Ho, Wo)
    # o_ref:    (Cout, TL)
    acc = jnp.dot(w_ref[...], cols_ref[...], preferred_element_type=jnp.float32)
    o_ref[...] = (acc + b_ref[...]).astype(o_ref.dtype)


def patch_merging_pallas(x_nchw, params):
    """PatchMerging forward: Conv2d(3x3, s2, p1) + eval-mode BatchNorm2d.
    x_nchw: (N, Cin, H, W) float32 -> (N, Cout, Ho, Wo)."""
    N, Cin, H, W = x_nchw.shape
    conv_w, conv_b = params["conv_w"], params["conv_b"]
    Cout = conv_w.shape[0]
    Ho, Wo = _conv_out_size(H), _conv_out_size(W)
    OW = Ho * Wo
    K = 9 * Cin

    # ---- fold inference-mode BatchNorm into the conv ----
    # TODO(synk): BatchNorm2d is folded in inference mode (running stats); training-mode
    # batch statistics are not computed in-kernel.
    scale = params["gamma"] / jnp.sqrt(params["var"] + params["eps"])           # (Cout,)
    w_fold = conv_w * scale[:, None, None, None]                                # (Cout, Cin, 3, 3)
    b_fold = (conv_b - params["mean"]) * scale + params["beta"]                 # (Cout,)
    w2 = w_fold.reshape(Cout, K)                       # K ordered (cin, dy, dx)
    b_col = b_fold.reshape(Cout, 1)

    # ---- im2col in the wrapper (XLA): strided slices of the zero-padded input ----
    # Produces RHS (K, N*Ho*Wo) so the kernel is a single MXU matmul with batch folded
    # into the lane axis (no 0/1 gather matrices, no per-tap micro matmuls).
    x_pad = jnp.pad(x_nchw, ((0, 0), (0, 0), (1, 1), (1, 1)))                   # (N, Cin, H+2, W+2)
    taps = []
    for dy in range(3):
        for dx in range(3):
            taps.append(x_pad[:, :, dy:dy + 2 * Ho:2, dx:dx + 2 * Wo:2])        # (N, Cin, Ho, Wo)
    cols = jnp.stack(taps, axis=2)                                              # (N, Cin, 9, Ho, Wo)
    cols = cols.reshape(N, K, OW)                                               # K order matches w2
    cols = jnp.transpose(cols, (1, 0, 2)).reshape(K, N * OW)                    # (K, L)

    L = N * OW
    TL, L_pad = _lane_tiling(L)
    if L_pad != L:
        cols = jnp.pad(cols, ((0, 0), (0, L_pad - L)))
    num_tiles = L_pad // TL

    cost = pl.CostEstimate(
        flops=2 * Cout * K * L_pad,
        transcendentals=0,
        bytes_accessed=4 * (Cout * K + Cout + K * L_pad + Cout * L_pad),
    )

    out = pl.pallas_call(
        patch_merging_kernel,
        out_shape=jax.ShapeDtypeStruct((Cout, L_pad), x_nchw.dtype),
        grid=(num_tiles,),
        in_specs=[
            pl.BlockSpec((Cout, K), lambda j: (0, 0)),     # grid-invariant, tiny
            pl.BlockSpec((Cout, 1), lambda j: (0, 0)),     # grid-invariant, tiny
            pl.BlockSpec((K, TL), lambda j: (0, j)),       # lane-tiled im2col
        ],
        out_specs=pl.BlockSpec((Cout, TL), lambda j: (0, j)),
        compiler_params=pltpu.CompilerParams(dimension_semantics=("parallel",)),
        cost_estimate=cost,
    )(w2, b_col, cols)

    out = out[:, :L].reshape(Cout, N, Ho, Wo)
    return jnp.transpose(out, (1, 0, 2, 3))                                     # (N, Cout, Ho, Wo)


def make_params(key, in_channels, out_channels):
    """Deterministic synthetic parameters matching the PyTorch module shapes."""
    ks = jax.random.split(key, 6)
    s = 1.0 / math.sqrt(in_channels * 9)
    return {
        "conv_w": jax.random.normal(ks[0], (out_channels, in_channels, 3, 3), jnp.float32) * s,
        "conv_b": jax.random.normal(ks[1], (out_channels,), jnp.float32) * s,
        "gamma": 0.5 + jax.random.uniform(ks[2], (out_channels,), jnp.float32),
        "beta": jax.random.normal(ks[3], (out_channels,), jnp.float32) * 0.1,
        "mean": jax.random.normal(ks[4], (out_channels,), jnp.float32) * 0.1,
        "var": 0.5 + jax.random.uniform(ks[5], (out_channels,), jnp.float32),
        "eps": 1e-5,
    }


def patch_merging_reference(x_nchw, params):
    """Pure-JAX reference: Conv2d(3x3, s2, p1) + eval-mode BatchNorm2d."""
    conv = lax.conv_general_dilated(
        x_nchw, params["conv_w"], window_strides=(2, 2), padding=((1, 1), (1, 1)),
        dimension_numbers=("NCHW", "OIHW", "NCHW"))
    conv = conv + params["conv_b"][None, :, None, None]
    scale = params["gamma"] / jnp.sqrt(params["var"] + params["eps"])
    return ((conv - params["mean"][None, :, None, None]) * scale[None, :, None, None]
            + params["beta"][None, :, None, None])


if __name__ == "__main__":
    key = jax.random.PRNGKey(0)
    kx, kp = jax.random.split(key)

    N, Cin, H, W = 2, 4, 16, 16
    Cout = 8

    x = jax.random.normal(kx, (N, Cin, H, W), jnp.float32)
    params = make_params(kp, Cin, Cout)

    out = jax.block_until_ready(patch_merging_pallas(x, params))
    ref = jax.block_until_ready(patch_merging_reference(x, params))

    assert out.shape == (N, Cout, H // 2, W // 2), out.shape
    assert jnp.allclose(out, ref, atol=1e-4, rtol=1e-4), float(jnp.max(jnp.abs(out - ref)))

    print("KERNEL_OK")
</pallas_src>

<mosaic_0001>
module attributes {stable_mosaic.version = 11 : i64} {
  func.func @patch_merging_kernel(%arg0: i32, %arg1: memref<8x36xf32, #tpu.memory_space<vmem>>, %arg2: memref<8x1xf32, #tpu.memory_space<vmem>>, %arg3: memref<36x128xf32, #tpu.memory_space<vmem>>, %arg4: memref<8x128xf32, #tpu.memory_space<vmem>>) attributes {dimension_semantics = [#tpu.dimension_semantics<parallel>], iteration_bounds = array<i64: 1>, scalar_prefetch = 0 : i64, scratch_operands = 0 : i64, tpu.core_type = #tpu.core_type<tc>, window_params = [{pipeline_mode = #tpu.pipeline_mode<synchronous>, transform_indices = @transform_0, window_bounds = array<i64: 8, 36>}, {pipeline_mode = #tpu.pipeline_mode<synchronous>, transform_indices = @transform_1, window_bounds = array<i64: 8, 1>}, {transform_indices = @transform_2, window_bounds = array<i64: 36, 128>}, {transform_indices = @transform_3, window_bounds = array<i64: 8, 128>}]} {
    %c0 = arith.constant 0 : index
    %c0_0 = arith.constant 0 : index
    %0 = vector.load %arg1[%c0, %c0_0] : memref<8x36xf32, #tpu.memory_space<vmem>>, vector<8x36xf32>
    %c0_1 = arith.constant 0 : index
    %c0_2 = arith.constant 0 : index
    %1 = vector.load %arg3[%c0_1, %c0_2] : memref<36x128xf32, #tpu.memory_space<vmem>>, vector<36x128xf32>
    %cst = arith.constant dense<0.000000e+00> : vector<8x128xf32>
    %2 = tpu.matmul %0, %1, %cst {dimension_numbers = #tpu.dot_dimension_numbers<[1], [0], [0], [1], [0, 0, 1, 1], [], []>} : vector<8x36xf32>, vector<36x128xf32>, vector<8x128xf32> -> vector<8x128xf32>
    %c0_3 = arith.constant 0 : index
    %c0_4 = arith.constant 0 : index
    %3 = vector.load %arg2[%c0_3, %c0_4] : memref<8x1xf32, #tpu.memory_space<vmem>>, vector<8x1xf32>
    %4 = vector.broadcast %3 : vector<8x1xf32> to vector<8x128xf32>
    %5 = arith.addf %2, %4 : vector<8x128xf32>
    %c0_5 = arith.constant 0 : index
    %c0_6 = arith.constant 0 : index
    %6 = vector.load %arg4[%c0_5, %c0_6] : memref<8x128xf32, #tpu.memory_space<vmem>>, vector<8x128xf32>
    tpu.vector_store %arg4[%c0_5, %c0_6], %5 {strides = array<i32>} : memref<8x128xf32, #tpu.memory_space<vmem>>, vector<8x128xf32>,
    return
  }
  func.func @transform_0(%arg0: i32) -> (i32, i32) {
    %c0_i32 = arith.constant 0 : i32
    %c0_i32_0 = arith.constant 0 : i32
    %c0_i32_1 = arith.constant 0 : i32
    return %c0_i32, %c0_i32_0 : i32, i32
  }
  func.func @transform_1(%arg0: i32) -> (i32, i32) {
    %c0_i32 = arith.constant 0 : i32
    %c0_i32_0 = arith.constant 0 : i32
    %c0_i32_1 = arith.constant 0 : i32
    return %c0_i32, %c0_i32_0 : i32, i32
  }
  func.func @transform_2(%arg0: i32) -> (i32, i32) {
    %c0_i32 = arith.constant 0 : i32
    %c0_i32_0 = arith.constant 0 : i32
    return %c0_i32, %arg0 : i32, i32
  }
  func.func @transform_3(%arg0: i32) -> (i32, i32) {
    %c0_i32 = arith.constant 0 : i32
    %c0_i32_0 = arith.constant 0 : i32
    return %c0_i32, %arg0 : i32, i32
  }
}

</mosaic_0001>

<llo_original>
// kernel: tpu_custom_call.1
$region0: #{tpu_custom_call.1}
  #allocation0 [shape = 'u32[]', space=smem, size = 0x4, offset = 0x4, fixed_abs, tag = 'smem constant byte address 0x4 - core index']
  #allocation1 [shape = 'u32[72,128]{1,0:T(1,128)}', space=vmem, size = 0x9000, scoped, tag = 'internal scratch']
  %s0 = inlined_call_operand.vmem [shape: f32[8,36], index: 0, kind: input, shape index: {}]
  %s1 = inlined_call_operand.vmem [shape: f32[8,1], index: 1, kind: input, shape index: {}]
  %s2 = inlined_call_operand.hbm [shape: f32[36,128], index: 2, kind: input, shape index: {}]
  %s3 = inlined_call_operand.hbm [shape: f32[8,128], index: 3, kind: output, shape index: {}]
  %s4 = sld [smem:[#allocation0]]
  $region26: #{tpu_custom_call.1} parent=0
    _
  %s6 = ssub.s32 1, %s4
  %s7 = scalar_select 0, %s6, %s4
  $region1: #{tpu_custom_call.1} parent=0
    #allocation2 [shape = 'u8[20480]{0}', space=vmem, size = 0x5000, scoped, tag = 'input window, operand 2, single buffered']
    #allocation3 [shape = 's32[1]{0}', space=sflag, size = 0x4, scoped, tag = 'scoped memory for tpu_custom_call.1']
    #allocation4 [shape = 's32[1]{0}', space=sflag, size = 0x4, scoped, tag = 'scoped memory for tpu_custom_call.1']
    #allocation5 [shape = 'u8[4096]{0}', space=vmem, size = 0x1000, scoped, tag = 'output window, operand 0, single buffered']
    %8 = vsyncpa [#allocation3], 0
    %9 = vsyncpa [#allocation4], 0
    // Predicated region
    $region2: #{tpu_custom_call.1} parent=1 // pred_check
      _
    $region3: #{tpu_custom_call.1} parent=1 // pred_check_branch
      %11 = sbr.rel (0) target = $region5
    $region4: #{tpu_custom_call.1} parent=1 // pred_region
      _
    $region5: #{tpu_custom_call.1} parent=1 // pred_fallthru
      _
    // Predicated region
    $region6: #{tpu_custom_call.1} parent=1 // pred_check
      _
    $region7: #{tpu_custom_call.1} parent=1 // pred_check_branch
      %13 = sbr.rel (0) target = $region9
    $region8: #{tpu_custom_call.1} parent=1 // pred_region
      _
    $region9: #{tpu_custom_call.1} parent=1 // pred_fallthru
      _
    // Predicated region
    $region10: #{tpu_custom_call.1} parent=1 // pred_check
      _
    $region11: #{tpu_custom_call.1} parent=1 // pred_check_branch
      %15 = sbr.rel (0) target = $region13
    $region12: #{tpu_custom_call.1} parent=1 // pred_region
      %17 = vsyncadd [#allocation3], 0
      %s18 = sshll.u32 %s2, 4
      %s19 = int_to_ptr.hbm [resolvable:$true] %s18
      %s20 = sshll.u32 [#allocation2], 4
      %s21 = int_to_ptr.vmem [resolvable:$true] %s20
      %26 = dma.hbm_to_vmem [thread:$0]  %s19, 640, %s21, [#allocation3], 128, 128, 8
    $region13: #{tpu_custom_call.1} parent=1 // pred_fallthru
      _
    // Predicated region
    $region14: #{tpu_custom_call.1} parent=1 // pred_check
      _
    $region15: #{tpu_custom_call.1} parent=1 // pred_check_branch
      %28 = sbr.rel (0) target = $region17
    $region16: #{tpu_custom_call.1} parent=1 // pred_region
      %30 = dma.done [#allocation3], 640
    $region17: #{tpu_custom_call.1} parent=1 // pred_fallthru
      _
    %v31 = vld [vmem:[%s0] sm:$0xff]
    %v32 = vld [vmem:[#allocation2] sm:$0xff]
    %v33 = vld [vmem:[#allocation2 + $0x8] sm:$0xff]
    %v34 = vld [vmem:[#allocation2 + $0x10] sm:$0xff]
    %v35 = vld [vmem:[#allocation2 + $0x18] sm:$0xff]
    %v36 = vld [vmem:[#allocation2 + $0x20] sm:$0xf]
    %v37 = vld [vmem:[%s1] sm:$0xff]
    %39 = vset.pattern.permute.xlu0 0
    %40 = vperm.xlu0 %39, %v37
    %v41 = vpop.permute.xlu0 %40
    %vm43 = vcmask 293888
    %v45 = vsel %vm43, %v31, 0
    %vm47 = vcmask 1043456
    %v49 = vsel %vm47, %v36, 0
    %51 = vmatpush.msra.mxu0 0.0
    %52 = vmatpush.msra.mxu0 0.0
    %53 = vmatpush.msra.mxu0 0.0
    %54 = vmatpush.msra.mxu0 0.0
    %55 = vmatpush.msra.mxu0 0.0
    %56 = vmatpush.msra.mxu0 0.0
    %57 = vmatpush.msra.mxu0 0.0
    %58 = vmatpush.msra.mxu0 0.0
    %59 = vmatpush.msra.mxu0 0.0
    %60 = vmatpush.msra.mxu0 0.0
    %61 = vmatpush.msra.mxu0 0.0
    %62 = vmatpush.msra.mxu0 %v49
    %63 = vmatpush.msra.mxu0 %v35
    %64 = vmatpush.msra.mxu0 %v34
    %65 = vmatpush.msra.mxu0 %v33
    %66 = vmatpush.msra.mxu0 %v32
    %67 = vmatmul.f32.gmra.mxu0 %v45
    %v68 = vpop.f32.mrf.mxu0
    %v69 = vadd.f32 %v41, %v68
    %70 = vdwg.mxu0
    %71 = vst [vmem:[#allocation5] sm:$0xff] %v69
    // Predicated region
    $region18: #{tpu_custom_call.1} parent=1 // pred_check
      _
    $region19: #{tpu_custom_call.1} parent=1 // pred_check_branch
      %73 = sbr.rel (0) target = $region21
    $region20: #{tpu_custom_call.1} parent=1 // pred_region
      %75 = vsyncadd [#allocation4], 0
      %s77 = sshll.u32 [#allocation5], 4
      %s78 = int_to_ptr.vmem [resolvable:$true] %s77
      %s79 = sshll.u32 %s3, 4
      %s80 = int_to_ptr.hbm [resolvable:$true] %s79
      %82 = dma.vmem_to_hbm [thread:$0]  %s78, 128, %s80, [#allocation4]
    $region21: #{tpu_custom_call.1} parent=1 // pred_fallthru
      _
    // Predicated region
    $region22: #{tpu_custom_call.1} parent=1 // pred_check
      _
    $region23: #{tpu_custom_call.1} parent=1 // pred_check_branch
      %84 = sbr.rel (0) target = $region25
    $region24: #{tpu_custom_call.1} parent=1 // pred_region
      %86 = dma.done [#allocation4], 128
    $region25: #{tpu_custom_call.1} parent=1 // pred_fallthru
      _
    %87 = vsyncpa [#allocation3], 1
    %88 = vsyncpa [#allocation4], 1

</llo_original>
